<compile_context>
chip_gen: v7x
topology: tpu7x:2x2x1
jax: 0.10.0
libtpu: 0.0.40
codegen_flags: <defaults>
</compile_context>

<pallas_src>
import jax
import jax.numpy as jnp
from jax.experimental import pallas as pl
from jax.experimental.pallas import tpu as pltpu

_LANE = 128


def _round_up(n, m):
    return ((n + m - 1) // m) * m


def _mlp_kernel(x_ref, w1_ref, b1_ref, w2_ref, b2_ref, w3_ref, b3_ref,
                out_ref, feat_ref):
    # One TM-row tile of the batch; all weights resident in VMEM.
    x = x_ref[...]

    # lin1 + ReLU   (dropout in eval mode == identity)
    h1 = jnp.dot(x, w1_ref[...], preferred_element_type=jnp.float32) + b1_ref[...]
    h1 = jnp.maximum(h1, 0.0)

    # lin2 + ReLU   (dropout in eval mode == identity)
    h2 = jnp.dot(h1, w2_ref[...], preferred_element_type=jnp.float32) + b2_ref[...]
    h2 = jnp.maximum(h2, 0.0)
    feat_ref[...] = h2.astype(feat_ref.dtype)

    # lin3: output width 1 -> VPU multiply + lane reduce instead of an MXU
    # matmul that would use only 1/128 (1/256 on v6e/v7x) of the output lanes.
    out = jnp.sum(h2 * w3_ref[...], axis=-1, keepdims=True) + b3_ref[0]
    out_ref[...] = out.astype(out_ref.dtype)


@jax.jit
def mlp_forward(x, params):
    """x: [N, num_features] f32. Returns (out [N], features [N, nhid//2])."""
    w1, b1, w2, b2, w3, b3 = params   # w stored [in, out]; b stored [1, out]
    N, F = x.shape
    H = w1.shape[1]           # nhid
    H2 = w2.shape[1]          # nhid // 2

    # Lane-dense padding of every feature axis.
    Fp = _round_up(F, _LANE)
    Hp = _round_up(H, _LANE)
    H2p = _round_up(H2, _LANE)

    # Batch tile: 256 rows when the batch is big, else the sublane-aligned N.
    TM = min(256, _round_up(N, 8))
    Np = _round_up(N, TM)

    f32 = jnp.float32
    xp = jnp.zeros((Np, Fp), f32).at[:N, :F].set(x.astype(f32))
    w1p = jnp.zeros((Fp, Hp), f32).at[:F, :H].set(w1)
    b1p = jnp.zeros((1, Hp), f32).at[:, :H].set(b1)
    w2p = jnp.zeros((Hp, H2p), f32).at[:H, :H2].set(w2)
    b2p = jnp.zeros((1, H2p), f32).at[:, :H2].set(b2)
    w3p = jnp.zeros((1, H2p), f32).at[:, :H2].set(w3.reshape(1, H2))
    b3p = b3.reshape((1,)).astype(f32)

    out2d, featp = pl.pallas_call(
        _mlp_kernel,
        out_shape=(
            jax.ShapeDtypeStruct((Np, 1), f32),
            jax.ShapeDtypeStruct((Np, H2p), f32),
        ),
        grid=(Np // TM,),
        in_specs=[
            pl.BlockSpec((TM, Fp), lambda i: (i, 0)),            # x tile (pipelined)
            pl.BlockSpec((Fp, Hp), lambda i: (0, 0)),            # w1 (resident)
            pl.BlockSpec((1, Hp), lambda i: (0, 0)),             # b1 (resident)
            pl.BlockSpec((Hp, H2p), lambda i: (0, 0)),           # w2 (resident)
            pl.BlockSpec((1, H2p), lambda i: (0, 0)),            # b2 (resident)
            pl.BlockSpec((1, H2p), lambda i: (0, 0)),            # w3 row (resident)
            pl.BlockSpec(memory_space=pltpu.MemorySpace.SMEM),   # b3 scalar
        ],
        out_specs=(
            pl.BlockSpec((TM, 1), lambda i: (i, 0)),
            pl.BlockSpec((TM, H2p), lambda i: (i, 0)),
        ),
        compiler_params=pltpu.CompilerParams(
            dimension_semantics=("parallel",),
            vmem_limit_bytes=32 * 1024 * 1024,
        ),
    )(xp, w1p, b1p, w2p, b2p, w3p, b3p)

    # torch.flatten on an [N, 1] tensor -> [N]; drop padding on both outputs.
    return out2d[:N, 0], featp[:N, :H2]


def init_params(key, num_features, nhid):
    """Deterministic init mimicking nn.Linear's U(-1/sqrt(fan_in), 1/sqrt(fan_in)).
    Weights stored as [in, out] (transposed vs PyTorch's [out, in])."""
    def linear(k, fan_in, fan_out):
        kw, kb = jax.random.split(k)
        bound = 1.0 / jnp.sqrt(fan_in)
        w = jax.random.uniform(kw, (fan_in, fan_out), jnp.float32, -bound, bound)
        b = jax.random.uniform(kb, (1, fan_out), jnp.float32, -bound, bound)
        return w, b

    k1, k2, k3 = jax.random.split(key, 3)
    w1, b1 = linear(k1, num_features, nhid)
    w2, b2 = linear(k2, nhid, nhid // 2)
    w3, b3 = linear(k3, nhid // 2, 1)
    return (w1, b1, w2, b2, w3, b3)


if __name__ == "__main__":
    key = jax.random.PRNGKey(0)
    kx, kp = jax.random.split(key)

    # Small shapes consistent with the module: batch of 8 samples,
    # num_features=32, nhid=32 (so features are [8, 16]).
    N, num_features, nhid = 8, 32, 32
    x = jax.random.normal(kx, (N, num_features), dtype=jnp.float32)
    params = init_params(kp, num_features, nhid)

    out, features = mlp_forward(x, params)
    out = jax.block_until_ready(out)
    features = jax.block_until_ready(features)

    # Sanity check against a plain-JAX reference of the same forward pass.
    w1, b1, w2, b2, w3, b3 = params
    h1 = jnp.maximum(x @ w1 + b1, 0.0)
    h2 = jnp.maximum(h1 @ w2 + b2, 0.0)
    ref_out = (h2 @ w3 + b3).reshape(-1)
    assert out.shape == (N,)
    assert features.shape == (N, nhid // 2)
    assert jnp.allclose(out, ref_out, atol=1e-4, rtol=1e-4)
    assert jnp.allclose(features, h2, atol=1e-4, rtol=1e-4)

    print("KERNEL_OK")
</pallas_src>

<mosaic_0001>
module attributes {stable_mosaic.version = 11 : i64} {
  func.func @_mlp_kernel(%arg0: i32, %arg1: memref<8x128xf32, #tpu.memory_space<vmem>>, %arg2: memref<128x128xf32, #tpu.memory_space<vmem>>, %arg3: memref<1x128xf32, #tpu.memory_space<vmem>>, %arg4: memref<128x128xf32, #tpu.memory_space<vmem>>, %arg5: memref<1x128xf32, #tpu.memory_space<vmem>>, %arg6: memref<1x128xf32, #tpu.memory_space<vmem>>, %arg7: memref<1xf32, #tpu.memory_space<smem>>, %arg8: memref<8x1xf32, #tpu.memory_space<vmem>>, %arg9: memref<8x128xf32, #tpu.memory_space<vmem>>) attributes {dimension_semantics = [#tpu.dimension_semantics<parallel>], iteration_bounds = array<i64: 1>, scalar_prefetch = 0 : i64, scratch_operands = 0 : i64, tpu.core_type = #tpu.core_type<tc>, window_params = [{transform_indices = @transform_0, window_bounds = array<i64: 8, 128>}, {pipeline_mode = #tpu.pipeline_mode<synchronous>, transform_indices = @transform_1, window_bounds = array<i64: 128, 128>}, {pipeline_mode = #tpu.pipeline_mode<synchronous>, transform_indices = @transform_2, window_bounds = array<i64: 1, 128>}, {pipeline_mode = #tpu.pipeline_mode<synchronous>, transform_indices = @transform_3, window_bounds = array<i64: 128, 128>}, {pipeline_mode = #tpu.pipeline_mode<synchronous>, transform_indices = @transform_4, window_bounds = array<i64: 1, 128>}, {pipeline_mode = #tpu.pipeline_mode<synchronous>, transform_indices = @transform_5, window_bounds = array<i64: 1, 128>}, {transform_indices = @transform_6, window_bounds = array<i64: 1>}, {transform_indices = @transform_7, window_bounds = array<i64: 8, 1>}, {transform_indices = @transform_8, window_bounds = array<i64: 8, 128>}]} {
    %c0 = arith.constant 0 : index
    %c0_0 = arith.constant 0 : index
    %0 = vector.load %arg1[%c0, %c0_0] : memref<8x128xf32, #tpu.memory_space<vmem>>, vector<8x128xf32>
    %c0_1 = arith.constant 0 : index
    %c0_2 = arith.constant 0 : index
    %1 = vector.load %arg2[%c0_1, %c0_2] : memref<128x128xf32, #tpu.memory_space<vmem>>, vector<128x128xf32>
    %cst = arith.constant dense<0.000000e+00> : vector<8x128xf32>
    %2 = tpu.matmul %0, %1, %cst {dimension_numbers = #tpu.dot_dimension_numbers<[1], [0], [0], [1], [0, 0, 1, 1], [], []>} : vector<8x128xf32>, vector<128x128xf32>, vector<8x128xf32> -> vector<8x128xf32>
    %c0_3 = arith.constant 0 : index
    %c0_4 = arith.constant 0 : index
    %3 = vector.load %arg3[%c0_3, %c0_4] : memref<1x128xf32, #tpu.memory_space<vmem>>, vector<1x128xf32>
    %4 = vector.broadcast %3 : vector<1x128xf32> to vector<8x128xf32>
    %5 = arith.addf %2, %4 : vector<8x128xf32>
    %cst_5 = arith.constant 0.000000e+00 : f32
    %6 = vector.broadcast %cst_5 : f32 to vector<8x128xf32>
    %7 = arith.maximumf %5, %6 : vector<8x128xf32>
    %c0_6 = arith.constant 0 : index
    %c0_7 = arith.constant 0 : index
    %8 = vector.load %arg4[%c0_6, %c0_7] : memref<128x128xf32, #tpu.memory_space<vmem>>, vector<128x128xf32>
    %cst_8 = arith.constant dense<0.000000e+00> : vector<8x128xf32>
    %9 = tpu.matmul %7, %8, %cst_8 {dimension_numbers = #tpu.dot_dimension_numbers<[1], [0], [0], [1], [0, 0, 1, 1], [], []>} : vector<8x128xf32>, vector<128x128xf32>, vector<8x128xf32> -> vector<8x128xf32>
    %c0_9 = arith.constant 0 : index
    %c0_10 = arith.constant 0 : index
    %10 = vector.load %arg5[%c0_9, %c0_10] : memref<1x128xf32, #tpu.memory_space<vmem>>, vector<1x128xf32>
    %11 = vector.broadcast %10 : vector<1x128xf32> to vector<8x128xf32>
    %12 = arith.addf %9, %11 : vector<8x128xf32>
    %cst_11 = arith.constant 0.000000e+00 : f32
    %13 = vector.broadcast %cst_11 : f32 to vector<8x128xf32>
    %14 = arith.maximumf %12, %13 : vector<8x128xf32>
    %c0_12 = arith.constant 0 : index
    %c0_13 = arith.constant 0 : index
    %15 = vector.load %arg9[%c0_12, %c0_13] : memref<8x128xf32, #tpu.memory_space<vmem>>, vector<8x128xf32>
    tpu.vector_store %arg9[%c0_12, %c0_13], %14 {strides = array<i32>} : memref<8x128xf32, #tpu.memory_space<vmem>>, vector<8x128xf32>,
    %c0_14 = arith.constant 0 : index
    %c0_15 = arith.constant 0 : index
    %16 = vector.load %arg6[%c0_14, %c0_15] : memref<1x128xf32, #tpu.memory_space<vmem>>, vector<1x128xf32>
    %17 = vector.broadcast %16 : vector<1x128xf32> to vector<8x128xf32>
    %18 = arith.mulf %14, %17 : vector<8x128xf32>
    %cst_16 = arith.constant dense<0.000000e+00> : vector<8xf32>
    %19 = vector.multi_reduction <add>, %18, %cst_16 [1] : vector<8x128xf32> to vector<8xf32>
    %20 = vector.shape_cast %19 : vector<8xf32> to vector<8x1xf32>
    %c0_17 = arith.constant 0 : index
    %21 = memref.load %arg7[%c0_17] : memref<1xf32, #tpu.memory_space<smem>>
    %22 = vector.broadcast %21 : f32 to vector<8x1xf32>
    %23 = arith.addf %20, %22 : vector<8x1xf32>
    %c0_18 = arith.constant 0 : index
    %c0_19 = arith.constant 0 : index
    %24 = vector.load %arg8[%c0_18, %c0_19] : memref<8x1xf32, #tpu.memory_space<vmem>>, vector<8x1xf32>
    tpu.vector_store %arg8[%c0_18, %c0_19], %23 {strides = array<i32>} : memref<8x1xf32, #tpu.memory_space<vmem>>, vector<8x1xf32>,
    return
  }
  func.func @transform_0(%arg0: i32) -> (i32, i32) {
    %c0_i32 = arith.constant 0 : i32
    %c0_i32_0 = arith.constant 0 : i32
    return %arg0, %c0_i32 : i32, i32
  }
  func.func @transform_1(%arg0: i32) -> (i32, i32) {
    %c0_i32 = arith.constant 0 : i32
    %c0_i32_0 = arith.constant 0 : i32
    %c0_i32_1 = arith.constant 0 : i32
    return %c0_i32, %c0_i32_0 : i32, i32
  }
  func.func @transform_2(%arg0: i32) -> (i32, i32) {
    %c0_i32 = arith.constant 0 : i32
    %c0_i32_0 = arith.constant 0 : i32
    %c0_i32_1 = arith.constant 0 : i32
    return %c0_i32, %c0_i32_0 : i32, i32
  }
  func.func @transform_3(%arg0: i32) -> (i32, i32) {
    %c0_i32 = arith.constant 0 : i32
    %c0_i32_0 = arith.constant 0 : i32
    %c0_i32_1 = arith.constant 0 : i32
    return %c0_i32, %c0_i32_0 : i32, i32
  }
  func.func @transform_4(%arg0: i32) -> (i32, i32) {
    %c0_i32 = arith.constant 0 : i32
    %c0_i32_0 = arith.constant 0 : i32
    %c0_i32_1 = arith.constant 0 : i32
    return %c0_i32, %c0_i32_0 : i32, i32
  }
  func.func @transform_5(%arg0: i32) -> (i32, i32) {
    %c0_i32 = arith.constant 0 : i32
    %c0_i32_0 = arith.constant 0 : i32
    %c0_i32_1 = arith.constant 0 : i32
    return %c0_i32, %c0_i32_0 : i32, i32
  }
  func.func @transform_6(%arg0: i32) -> i32 {
    %c0_i32 = arith.constant 0 : i32
    %c0_i32_0 = arith.constant 0 : i32
    return %c0_i32 : i32
  }
  func.func @transform_7(%arg0: i32) -> (i32, i32) {
    %c0_i32 = arith.constant 0 : i32
    %c0_i32_0 = arith.constant 0 : i32
    return %arg0, %c0_i32 : i32, i32
  }
  func.func @transform_8(%arg0: i32) -> (i32, i32) {
    %c0_i32 = arith.constant 0 : i32
    %c0_i32_0 = arith.constant 0 : i32
    return %arg0, %c0_i32 : i32, i32
  }
}

</mosaic_0001>

<llo_original>
// kernel: mlp_forward.1
$region0: #{mlp_forward.1}
  #allocation0 [shape = 'u32[]', space=smem, size = 0x4, offset = 0x4, fixed_abs, tag = 'smem constant byte address 0x4 - core index']
  #allocation1 [shape = 'u32[144,128]{1,0:T(1,128)}', space=vmem, size = 0x12000, scoped, tag = 'internal scratch']
  #allocation2 [shape = 'f32[1]{0:T(128)S(6)}', space=smem, size = 0x200, scoped, tag = 'scoped memory for mlp_forward.1']
  %s0 = inlined_call_operand.vmem [shape: f32[8,128], index: 0, kind: input, shape index: {}]
  %s1 = inlined_call_operand.vmem [shape: f32[128,128], index: 1, kind: input, shape index: {}]
  %s2 = inlined_call_operand.vmem [shape: f32[1,128], index: 2, kind: input, shape index: {}]
  %s3 = inlined_call_operand.vmem [shape: f32[128,128], index: 3, kind: input, shape index: {}]
  %s4 = inlined_call_operand.vmem [shape: f32[1,128], index: 4, kind: input, shape index: {}]
  %s5 = inlined_call_operand.vmem [shape: f32[1,128], index: 5, kind: input, shape index: {}]
  %s6 = inlined_call_operand.<no memory space> [shape: f32[1], index: 6, kind: input, shape index: {}]
  %s7 = inlined_call_operand.vmem [shape: f32[8,1], index: 7, kind: output, shape index: {0}]
  %s8 = inlined_call_operand.hbm [shape: f32[8,128], index: 8, kind: output, shape index: {1}]
  %9 = xla_tuple %s7, %s8
  %s10 = sld [smem:[#allocation0]]
  $region46: #{mlp_forward.1} parent=0
    _
  %s12 = ssub.s32 1, %s10
  %s13 = scalar_select 0, %s12, %s10
  %14 = sst [smem:[#allocation2]] %s6
  $region1: #{mlp_forward.1} parent=0
    #allocation3 [shape = 'u8[4096]{0}', space=vmem, size = 0x1000, scoped, tag = 'output window, operand 1, single buffered']
    #allocation4 [shape = 's32[1]{0}', space=sflag, size = 0x4, scoped, tag = 'scoped memory for mlp_forward.1']
    %15 = vsyncpa [#allocation4], 0
    // Predicated region
    $region2: #{mlp_forward.1} parent=1 // pred_check
      _
    $region3: #{mlp_forward.1} parent=1 // pred_check_branch
      %17 = sbr.rel (0) target = $region5
    $region4: #{mlp_forward.1} parent=1 // pred_region
      _
    $region5: #{mlp_forward.1} parent=1 // pred_fallthru
      _
    // Predicated region
    $region6: #{mlp_forward.1} parent=1 // pred_check
      _
    $region7: #{mlp_forward.1} parent=1 // pred_check_branch
      %19 = sbr.rel (0) target = $region9
    $region8: #{mlp_forward.1} parent=1 // pred_region
      _
    $region9: #{mlp_forward.1} parent=1 // pred_fallthru
      _
    // Predicated region
    $region10: #{mlp_forward.1} parent=1 // pred_check
      _
    $region11: #{mlp_forward.1} parent=1 // pred_check_branch
      %21 = sbr.rel (0) target = $region13
    $region12: #{mlp_forward.1} parent=1 // pred_region
      _
    $region13: #{mlp_forward.1} parent=1 // pred_fallthru
      _
    // Predicated region
    $region14: #{mlp_forward.1} parent=1 // pred_check
      _
    $region15: #{mlp_forward.1} parent=1 // pred_check_branch
      %23 = sbr.rel (0) target = $region17
    $region16: #{mlp_forward.1} parent=1 // pred_region
      _
    $region17: #{mlp_forward.1} parent=1 // pred_fallthru
      _
    // Predicated region
    $region18: #{mlp_forward.1} parent=1 // pred_check
      _
    $region19: #{mlp_forward.1} parent=1 // pred_check_branch
      %25 = sbr.rel (0) target = $region21
    $region20: #{mlp_forward.1} parent=1 // pred_region
      _
    $region21: #{mlp_forward.1} parent=1 // pred_fallthru
      _
    // Predicated region
    $region22: #{mlp_forward.1} parent=1 // pred_check
      _
    $region23: #{mlp_forward.1} parent=1 // pred_check_branch
      %27 = sbr.rel (0) target = $region25
    $region24: #{mlp_forward.1} parent=1 // pred_region
      _
    $region25: #{mlp_forward.1} parent=1 // pred_fallthru
      _
    // Predicated region
    $region26: #{mlp_forward.1} parent=1 // pred_check
      _
    $region27: #{mlp_forward.1} parent=1 // pred_check_branch
      %29 = sbr.rel (0) target = $region29
    $region28: #{mlp_forward.1} parent=1 // pred_region
      _
    $region29: #{mlp_forward.1} parent=1 // pred_fallthru
      _
    %v30 = vld [vmem:[%s0] sm:$0xff]
    %v31 = vld [vmem:[%s1] sm:$0xff]
    %v32 = vld [vmem:[%s1 + $0x8] sm:$0xff]
    %v33 = vld [vmem:[%s1 + $0x10] sm:$0xff]
    %v34 = vld [vmem:[%s1 + $0x18] sm:$0xff]
    %v35 = vld [vmem:[%s1 + $0x20] sm:$0xff]
    %v36 = vld [vmem:[%s1 + $0x28] sm:$0xff]
    %v37 = vld [vmem:[%s1 + $0x30] sm:$0xff]
    %v38 = vld [vmem:[%s1 + $0x38] sm:$0xff]
    %v39 = vld [vmem:[%s1 + $0x40] sm:$0xff]
    %v40 = vld [vmem:[%s1 + $0x48] sm:$0xff]
    %v41 = vld [vmem:[%s1 + $0x50] sm:$0xff]
    %v42 = vld [vmem:[%s1 + $0x58] sm:$0xff]
    %v43 = vld [vmem:[%s1 + $0x60] sm:$0xff]
    %v44 = vld [vmem:[%s1 + $0x68] sm:$0xff]
    %v45 = vld [vmem:[%s1 + $0x70] sm:$0xff]
    %v46 = vld [vmem:[%s1 + $0x78] sm:$0xff]
    %v47 = vld [vmem:[%s2] sm:$0x1]
    %v49 = vlaneseq
    %v50 = vshrl.u32 %v49, 7
    %v51 = vsub.s32 0, %v50
    %v52 = vrot.slane %v47, %v51
    %54 = vmatprep.subr.mxu0 0.0
    %55 = vmatpush1.msra.mxu0 %v31
    %56 = vmatprep.subr.mxu0 0.0
    %57 = vmatpush1.msra.mxu0 %v32
    %58 = vmatprep.subr.mxu0 0.0
    %59 = vmatpush1.msra.mxu0 %v33
    %60 = vmatprep.subr.mxu0 0.0
    %61 = vmatpush1.msra.mxu0 %v34
    %62 = vmatprep.subr.mxu0 0.0
    %63 = vmatpush1.msra.mxu0 %v35
    %64 = vmatprep.subr.mxu0 0.0
    %65 = vmatpush1.msra.mxu0 %v36
    %66 = vmatprep.subr.mxu0 0.0
    %67 = vmatpush1.msra.mxu0 %v37
    %68 = vmatprep.subr.mxu0 0.0
    %69 = vmatpush1.msra.mxu0 %v38
    %70 = vmatprep.subr.mxu0 0.0
    %71 = vmatpush1.msra.mxu0 %v39
    %72 = vmatprep.subr.mxu0 0.0
    %73 = vmatpush1.msra.mxu0 %v40
    %74 = vmatprep.subr.mxu0 0.0
    %75 = vmatpush1.msra.mxu0 %v41
    %76 = vmatprep.subr.mxu0 0.0
    %77 = vmatpush1.msra.mxu0 %v42
    %78 = vmatprep.subr.mxu0 0.0
    %79 = vmatpush1.msra.mxu0 %v43
    %80 = vmatprep.subr.mxu0 0.0
    %81 = vmatpush1.msra.mxu0 %v44
    %82 = vmatprep.subr.mxu0 0.0
    %83 = vmatpush1.msra.mxu0 %v45
    %84 = vmatprep.subr.mxu0 0.0
    %85 = vmatpush1.msra.mxu0 %v46
    %86 = vmatprep.subr.mxu0 0.0
    %87 = vmatpush1.msra.mxu0 0.0
    %88 = vmatprep.subr.mxu0 0.0
    %89 = vmatpush1.msra.mxu0 0.0
    %90 = vmatprep.subr.mxu0 0.0
    %91 = vmatpush1.msra.mxu0 0.0
    %92 = vmatprep.subr.mxu0 0.0
    %93 = vmatpush1.msra.mxu0 0.0
    %94 = vmatprep.subr.mxu0 0.0
    %95 = vmatpush1.msra.mxu0 0.0
    %96 = vmatprep.subr.mxu0 0.0
    %97 = vmatpush1.msra.mxu0 0.0
    %98 = vmatprep.subr.mxu0 0.0
    %99 = vmatpush1.msra.mxu0 0.0
    %100 = vmatprep.subr.mxu0 0.0
    %101 = vmatpush1.msra.mxu0 0.0
    %102 = vmatprep.subr.mxu0 0.0
    %103 = vmatpush1.msra.mxu0 0.0
    %104 = vmatprep.subr.mxu0 0.0
    %105 = vmatpush1.msra.mxu0 0.0
    %106 = vmatprep.subr.mxu0 0.0
    %107 = vmatpush1.msra.mxu0 0.0
    %108 = vmatprep.subr.mxu0 0.0
    %109 = vmatpush1.msra.mxu0 0.0
    %110 = vmatprep.subr.mxu0 0.0
    %111 = vmatpush1.msra.mxu0 0.0
    %112 = vmatprep.subr.mxu0 0.0
    %113 = vmatpush1.msra.mxu0 0.0
    %114 = vmatprep.subr.mxu0 0.0
    %115 = vmatpush1.msra.mxu0 0.0
    %116 = vmatprep.subr.mxu0 0.0
    %117 = vmatpush1.msra.mxu0 0.0
    %118 = vmatprep.mubr.f32.mxu0 0.0
    %119 = vmatmul.mubr.f32.gmra.mrb[0].mxu0 %v30
    %v120 = vpop.f32.mrb[0].mxu0
    %v121 = vadd.f32 %v52, %v120
    %v122 = vpop.f32.mrb[0].mxu0
    %123 = vdwg.mxu0
    %v124 = vmax.f32 %v121, 0.0
    %v125 = vld [vmem:[%s3] sm:$0xff]
    %v126 = vld [vmem:[%s3 + $0x8] sm:$0xff]
    %v127 = vld [vmem:[%s3 + $0x10] sm:$0xff]
    %v128 = vld [vmem:[%s3 + $0x18] sm:$0xff]
    %v129 = vld [vmem:[%s3 + $0x20] sm:$0xff]
    %v130 = vld [vmem:[%s3 + $0x28] sm:$0xff]
    %v131 = vld [vmem:[%s3 + $0x30] sm:$0xff]
    %v132 = vld [vmem:[%s3 + $0x38] sm:$0xff]
    %v133 = vld [vmem:[%s3 + $0x40] sm:$0xff]
    %v134 = vld [vmem:[%s3 + $0x48] sm:$0xff]
    %v135 = vld [vmem:[%s3 + $0x50] sm:$0xff]
    %v136 = vld [vmem:[%s3 + $0x58] sm:$0xff]
    %v137 = vld [vmem:[%s3 + $0x60] sm:$0xff]
    %v138 = vld [vmem:[%s3 + $0x68] sm:$0xff]
    %v139 = vld [vmem:[%s3 + $0x70] sm:$0xff]
    %v140 = vld [vmem:[%s3 + $0x78] sm:$0xff]
    %v141 = vld [vmem:[%s4] sm:$0x1]
    %v143 = vlaneseq
    %v144 = vshrl.u32 %v143, 7
    %v145 = vsub.s32 0, %v144
    %v146 = vrot.slane %v141, %v145
    %148 = vmatprep.subr.mxu0 0.0
    %149 = vmatpush1.msra.mxu0 %v125
    %150 = vmatprep.subr.mxu0 0.0
    %151 = vmatpush1.msra.mxu0 %v126
    %152 = vmatprep.subr.mxu0 0.0
    %153 = vmatpush1.msra.mxu0 %v127
    %154 = vmatprep.subr.mxu0 0.0
    %155 = vmatpush1.msra.mxu0 %v128
    %156 = vmatprep.subr.mxu0 0.0
    %157 = vmatpush1.msra.mxu0 %v129
    %158 = vmatprep.subr.mxu0 0.0
    %159 = vmatpush1.msra.mxu0 %v130
    %160 = vmatprep.subr.mxu0 0.0
    %161 = vmatpush1.msra.mxu0 %v131
    %162 = vmatprep.subr.mxu0 0.0
    %163 = vmatpush1.msra.mxu0 %v132
    %164 = vmatprep.subr.mxu0 0.0
    %165 = vmatpush1.msra.mxu0 %v133
    %166 = vmatprep.subr.mxu0 0.0
    %167 = vmatpush1.msra.mxu0 %v134
    %168 = vmatprep.subr.mxu0 0.0
    %169 = vmatpush1.msra.mxu0 %v135
    %170 = vmatprep.subr.mxu0 0.0
    %171 = vmatpush1.msra.mxu0 %v136
    %172 = vmatprep.subr.mxu0 0.0
    %173 = vmatpush1.msra.mxu0 %v137
    %174 = vmatprep.subr.mxu0 0.0
    %175 = vmatpush1.msra.mxu0 %v138
    %176 = vmatprep.subr.mxu0 0.0
    %177 = vmatpush1.msra.mxu0 %v139
    %178 = vmatprep.subr.mxu0 0.0
    %179 = vmatpush1.msra.mxu0 %v140
    %180 = vmatprep.subr.mxu0 0.0
    %181 = vmatpush1.msra.mxu0 0.0
    %182 = vmatprep.subr.mxu0 0.0
    %183 = vmatpush1.msra.mxu0 0.0
    %184 = vmatprep.subr.mxu0 0.0
    %185 = vmatpush1.msra.mxu0 0.0
    %186 = vmatprep.subr.mxu0 0.0
    %187 = vmatpush1.msra.mxu0 0.0
    %188 = vmatprep.subr.mxu0 0.0
    %189 = vmatpush1.msra.mxu0 0.0
    %190 = vmatprep.subr.mxu0 0.0
    %191 = vmatpush1.msra.mxu0 0.0
    %192 = vmatprep.subr.mxu0 0.0
    %193 = vmatpush1.msra.mxu0 0.0
    %194 = vmatprep.subr.mxu0 0.0
    %195 = vmatpush1.msra.mxu0 0.0
    %196 = vmatprep.subr.mxu0 0.0
    %197 = vmatpush1.msra.mxu0 0.0
    %198 = vmatprep.subr.mxu0 0.0
    %199 = vmatpush1.msra.mxu0 0.0
    %200 = vmatprep.subr.mxu0 0.0
    %201 = vmatpush1.msra.mxu0 0.0
    %202 = vmatprep.subr.mxu0 0.0
    %203 = vmatpush1.msra.mxu0 0.0
    %204 = vmatprep.subr.mxu0 0.0
    %205 = vmatpush1.msra.mxu0 0.0
    %206 = vmatprep.subr.mxu0 0.0
    %207 = vmatpush1.msra.mxu0 0.0
    %208 = vmatprep.subr.mxu0 0.0
    %209 = vmatpush1.msra.mxu0 0.0
    %210 = vmatprep.subr.mxu0 0.0
    %211 = vmatpush1.msra.mxu0 0.0
    %212 = vmatprep.mubr.f32.mxu0 0.0
    %213 = vmatmul.mubr.f32.gmra.mrb[0].mxu0 %v124
    %v214 = vpop.f32.mrb[0].mxu0
    %v215 = vadd.f32 %v146, %v214
    %v216 = vpop.f32.mrb[0].mxu0
    %217 = vdwg.mxu0
    %v218 = vmax.f32 %v215, 0.0
    %219 = vst [vmem:[#allocation3] sm:$0xff] %v218
    %v220 = vld [vmem:[%s5] sm:$0x1]
    %v222 = vlaneseq
    %v223 = vshrl.u32 %v222, 7
    %v224 = vsub.s32 0, %v223
    %v225 = vrot.slane %v220, %v224
    %v227 = vmul.f32 %v218, %v225
    %228 = vadd.xlane.f32.xlu0 %v227
    %v229 = vpop.xlane.xlu0 %228
    %s230 = sld [smem:[#allocation2]]
    %v231 = vstv %s230
    %v232 = vadd.f32 %v229, %v231
    %vm233 = vcmask 7168
    %234 = vst.msk [vmem:[%s7] sm:$0xff] %vm233, %v232
    // Predicated region
    $region30: #{mlp_forward.1} parent=1 // pred_check
      _
    $region31: #{mlp_forward.1} parent=1 // pred_check_branch
      %236 = sbr.rel (0) target = $region33
    $region32: #{mlp_forward.1} parent=1 // pred_region
      _
    $region33: #{mlp_forward.1} parent=1 // pred_fallthru
      _
    // Predicated region
    $region34: #{mlp_forward.1} parent=1 // pred_check
      _
    $region35: #{mlp_forward.1} parent=1 // pred_check_branch
      %238 = sbr.rel (0) target = $region37
    $region36: #{mlp_forward.1} parent=1 // pred_region
      %s240 = ssub.s32 128, 128
      %241 = vsyncadd [#allocation4], %s240
      %s243 = sshll.u32 [#allocation3], 4
      %s244 = int_to_ptr.vmem [resolvable:$true] %s243
      %246 = dma.vmem_to_hbm [thread:$0]  %s244, 128, %s8, [#allocation4]
    $region37: #{mlp_forward.1} parent=1 // pred_fallthru
      _
    // Predicated region
    $region38: #{mlp_forward.1} parent=1 // pred_check
      _
    $region39: #{mlp_forward.1} parent=1 // pred_check_branch
      %248 = sbr.rel (0) target = $region41
    $region40: #{mlp_forward.1} parent=1 // pred_region
      _
    $region41: #{mlp_forward.1} parent=1 // pred_fallthru
      _
    // Predicated region
    $region42: #{mlp_forward.1} parent=1 // pred_check
      _
    $region43: #{mlp_forward.1} parent=1 // pred_check_branch
      %250 = sbr.rel (0) target = $region45
    $region44: #{mlp_forward.1} parent=1 // pred_region
      %251 = dma.done [#allocation4], 128
    $region45: #{mlp_forward.1} parent=1 // pred_fallthru
      _
    %252 = vsyncpa [#allocation4], 1

</llo_original>
